<compile_context>
chip_gen: v5e
topology: v5e:2x2
jax: 0.10.0
libtpu: 0.0.40
codegen_flags: <defaults>
</compile_context>

<pallas_src>
import jax
import jax.numpy as jnp
from jax.experimental import pallas as pl
from jax.experimental.pallas import tpu as pltpu

B = 2
S = 3
NPTS = 512            # points per frame (multiple of 128 lanes)
BS = B * S

# Deterministic stand-in for hyp / Vox_util test-time scene bounds
# (set_name == 'test' -> scene_centroid = (0, 1, 18)).
XMIN, XMAX = -16.0, 16.0
YMIN, YMAX = -1.0, 3.0
ZMIN, ZMAX = 2.0, 34.0


def _geom_kernel(TR_ref, TX0_ref, pts_ref, xyzR_ref, xyzX0_ref, inb_ref):
    """Whole-slab kernel (no grid).

    TR_ref, TX0_ref : (BS, 12) VMEM — top 3x4 rows of camRs_T_camXs / camX0s_T_camXs
    pts_ref         : (3, BS, NPTS) VMEM — coordinate-major camX points
    xyzR_ref        : (3, BS, NPTS) — xyz_camRs
    xyzX0_ref       : (3, BS, NPTS) — xyz_camX0s
    inb_ref         : (BS, NPTS)    — in-bounds mask (float)
    """
    x = pts_ref[0]                                    # (BS, NPTS), 6x512-dense vregs
    y = pts_ref[1]
    z = pts_ref[2]

    def apply_rigid(T, out_ref):
        # out[c] = R[c,0]*x + R[c,1]*y + R[c,2]*z + t[c]   (per-frame scalar coeffs
        # broadcast over the lane axis; translation folded in as a bias — no
        # homogeneous 'ones' row).
        rows = []
        for c in range(3):
            row = (T[:, 4 * c + 0:4 * c + 1] * x
                   + T[:, 4 * c + 1:4 * c + 2] * y
                   + T[:, 4 * c + 2:4 * c + 3] * z
                   + T[:, 4 * c + 3:4 * c + 4])
            rows.append(row)
        out_ref[...] = jnp.stack(rows, axis=0)        # single full-tile store
        return rows

    TR = TR_ref[...]
    TX0 = TX0_ref[...]
    apply_rigid(TR, xyzR_ref)                         # xyz_camRs
    x0, y0, z0 = apply_rigid(TX0, xyzX0_ref)          # xyz_camX0s

    inb = jnp.logical_and(x0 > XMIN, x0 < XMAX)
    inb = jnp.logical_and(inb, jnp.logical_and(y0 > YMIN, y0 < YMAX))
    inb = jnp.logical_and(inb, jnp.logical_and(z0 > ZMIN, z0 < ZMAX))
    inb_ref[...] = inb.astype(jnp.float32)            # single full-tile store


def carla_geometry_pallas(camRs_T_camXs, camX0s_T_camXs, xyz_camXs_cm):
    """Pallas-backed core of prepare_common_tensors.

    camRs_T_camXs, camX0s_T_camXs : (B, S, 4, 4)
    xyz_camXs_cm                  : (3, B, S, NPTS) coordinate-major point cloud
    """
    TR = camRs_T_camXs[:, :, :3, :].reshape(BS, 12).astype(jnp.float32)
    TX0 = camX0s_T_camXs[:, :, :3, :].reshape(BS, 12).astype(jnp.float32)
    pts_cm = xyz_camXs_cm.astype(jnp.float32).reshape(3, BS, NPTS)   # free reshape

    vmem = pl.BlockSpec(memory_space=pltpu.MemorySpace.VMEM)
    xyzR_cm, xyzX0_cm, inb = pl.pallas_call(
        _geom_kernel,
        out_shape=(
            jax.ShapeDtypeStruct((3, BS, NPTS), jnp.float32),   # xyz_camRs
            jax.ShapeDtypeStruct((3, BS, NPTS), jnp.float32),   # xyz_camX0s
            jax.ShapeDtypeStruct((BS, NPTS), jnp.float32),      # in-bounds mask
        ),
        in_specs=[vmem, vmem, vmem],
        out_specs=(vmem, vmem, vmem),
    )(TR, TX0, pts_cm)

    xyz_camRs = xyzR_cm.reshape(3, B, S, NPTS)        # free reshapes only
    xyz_camX0s = xyzX0_cm.reshape(3, B, S, NPTS)
    inbounds = inb.reshape(B, S, NPTS)
    # num_inb: sum the already-output mask in the wrapper (fuses for free,
    # avoids a lane-width-1 kernel output).
    num_inb = jnp.sum(inbounds, axis=-1)              # (B, S)
    return xyz_camRs, xyz_camX0s, inbounds, num_inb


# ----------------------------- JAX glue (4x4 algebra) ------------------------

def safe_inverse(T):
    """Rigid-transform inverse (utils.geom.safe_inverse), batched."""
    R = T[..., :3, :3]
    t = T[..., :3, 3:4]
    Rt = jnp.swapaxes(R, -1, -2)
    top = jnp.concatenate([Rt, -jnp.matmul(Rt, t)], axis=-1)
    bot = jnp.broadcast_to(jnp.array([0.0, 0.0, 0.0, 1.0], T.dtype), T[..., :1, :].shape)
    return jnp.concatenate([top, bot], axis=-2)


def carla_static_forward(origin_T_camRs, origin_T_camXs, xyz_camXs_cm):
    """Subset of CarlaStaticModel.prepare_common_tensors (test-time path)."""
    # utils.geom.get_camM_T_camXs(origin_T_camXs, ind=0)
    camX0s_T_camXs = jnp.einsum(
        'bij,bsjk->bsik', safe_inverse(origin_T_camXs[:, 0]), origin_T_camXs)
    # camRs_T_camXs = inverse(origin_T_camRs) @ origin_T_camXs
    camRs_T_camXs = jnp.matmul(safe_inverse(origin_T_camRs), origin_T_camXs)
    return carla_geometry_pallas(camRs_T_camXs, camX0s_T_camXs, xyz_camXs_cm)


# ----------------------------------- main ------------------------------------

if __name__ == "__main__":
    key = jax.random.PRNGKey(0)
    k1, k2, k3, k4, k5 = jax.random.split(key, 5)

    def make_rigid(kang, ktr, n):
        ang = jax.random.uniform(kang, (n,), minval=-0.3, maxval=0.3)
        c, s = jnp.cos(ang), jnp.sin(ang)
        z, o = jnp.zeros_like(c), jnp.ones_like(c)
        R = jnp.stack([jnp.stack([c, z, s], -1),
                       jnp.stack([z, o, z], -1),
                       jnp.stack([-s, z, c], -1)], -2)               # (n, 3, 3)
        t = jax.random.uniform(ktr, (n, 3, 1), minval=-2.0, maxval=2.0)
        top = jnp.concatenate([R, t], axis=-1)
        bot = jnp.broadcast_to(jnp.array([0.0, 0.0, 0.0, 1.0]), (n, 1, 4))
        return jnp.concatenate([top, bot], axis=-2)                  # (n, 4, 4)

    origin_T_camRs = make_rigid(k1, k2, BS).reshape(B, S, 4, 4)
    origin_T_camXs = make_rigid(k3, k4, BS).reshape(B, S, 4, 4)

    # Point cloud built directly in the coordinate-major layout used end-to-end.
    xyz_camXs_cm = jnp.stack([
        jax.random.uniform(k5, (B, S, NPTS), minval=-12.0, maxval=12.0),
        jax.random.uniform(jax.random.fold_in(k5, 1), (B, S, NPTS), minval=-2.0, maxval=4.0),
        jax.random.uniform(jax.random.fold_in(k5, 2), (B, S, NPTS), minval=1.0, maxval=36.0),
    ], axis=0)                                                       # (3, B, S, NPTS)

    xyz_camRs, xyz_camX0s, inbounds, num_inb = jax.block_until_ready(
        carla_static_forward(origin_T_camRs, origin_T_camXs, xyz_camXs_cm))

    # pure-JAX reference check
    camX0s_T_camXs = jnp.einsum(
        'bij,bsjk->bsik', safe_inverse(origin_T_camXs[:, 0]), origin_T_camXs)
    camRs_T_camXs = jnp.matmul(safe_inverse(origin_T_camRs), origin_T_camXs)

    def apply_ref(T, pts_cm):
        lin = jnp.einsum('bsck,kbsn->cbsn', T[..., :3, :3], pts_cm,
                         precision=jax.lax.Precision.HIGHEST)
        trans = jnp.transpose(T[..., :3, 3], (2, 0, 1))[..., None]   # (3, B, S, 1)
        return lin + trans

    ref_R = apply_ref(camRs_T_camXs, xyz_camXs_cm)
    ref_X0 = apply_ref(camX0s_T_camXs, xyz_camXs_cm)
    assert jnp.allclose(xyz_camRs, ref_R, atol=1e-3), "xyz_camRs mismatch"
    assert jnp.allclose(xyz_camX0s, ref_X0, atol=1e-3), "xyz_camX0s mismatch"

    # in-bounds mask / count checked against the kernel's xyz_camX0s output
    # (which is itself independently checked above); avoids flaky boundary
    # disagreements from float tolerance.
    x0, y0, z0 = xyz_camX0s[0], xyz_camX0s[1], xyz_camX0s[2]
    ref_inb = ((x0 > XMIN) & (x0 < XMAX)
               & (y0 > YMIN) & (y0 < YMAX)
               & (z0 > ZMIN) & (z0 < ZMAX)).astype(jnp.float32)
    assert jnp.allclose(inbounds, ref_inb), "inbounds mismatch"
    assert jnp.allclose(num_inb, ref_inb.sum(-1), atol=0.5), "num_inb mismatch"

    print("KERNEL_OK")
</pallas_src>

<mosaic_0001>
module attributes {stable_mosaic.version = 11 : i64} {
  func.func @_geom_kernel(%arg0: memref<6x12xf32, #tpu.memory_space<vmem>>, %arg1: memref<6x12xf32, #tpu.memory_space<vmem>>, %arg2: memref<3x6x512xf32, #tpu.memory_space<vmem>>, %arg3: memref<3x6x512xf32, #tpu.memory_space<vmem>>, %arg4: memref<3x6x512xf32, #tpu.memory_space<vmem>>, %arg5: memref<6x512xf32, #tpu.memory_space<vmem>>) attributes {dimension_semantics = [], scalar_prefetch = 0 : i64, scratch_operands = 0 : i64, tpu.core_type = #tpu.core_type<tc>} {
    %c0 = arith.constant 0 : index
    %c0_0 = arith.constant 0 : index
    %c0_1 = arith.constant 0 : index
    %0 = vector.load %arg2[%c0, %c0_0, %c0_1] : memref<3x6x512xf32, #tpu.memory_space<vmem>>, vector<1x6x512xf32>
    %1 = vector.shape_cast %0 : vector<1x6x512xf32> to vector<6x512xf32>
    %c1 = arith.constant 1 : index
    %c0_2 = arith.constant 0 : index
    %c0_3 = arith.constant 0 : index
    %2 = vector.load %arg2[%c1, %c0_2, %c0_3] : memref<3x6x512xf32, #tpu.memory_space<vmem>>, vector<1x6x512xf32>
    %3 = vector.shape_cast %2 : vector<1x6x512xf32> to vector<6x512xf32>
    %c2 = arith.constant 2 : index
    %c0_4 = arith.constant 0 : index
    %c0_5 = arith.constant 0 : index
    %4 = vector.load %arg2[%c2, %c0_4, %c0_5] : memref<3x6x512xf32, #tpu.memory_space<vmem>>, vector<1x6x512xf32>
    %5 = vector.shape_cast %4 : vector<1x6x512xf32> to vector<6x512xf32>
    %c0_6 = arith.constant 0 : index
    %c0_7 = arith.constant 0 : index
    %6 = vector.load %arg0[%c0_6, %c0_7] : memref<6x12xf32, #tpu.memory_space<vmem>>, vector<6x12xf32>
    %c0_8 = arith.constant 0 : index
    %c0_9 = arith.constant 0 : index
    %7 = vector.load %arg1[%c0_8, %c0_9] : memref<6x12xf32, #tpu.memory_space<vmem>>, vector<6x12xf32>
    %8 = vector.extract_strided_slice %6 {offsets = [0, 0], sizes = [6, 1], strides = [1, 1]} : vector<6x12xf32> to vector<6x1xf32>
    %9 = vector.broadcast %8 : vector<6x1xf32> to vector<6x512xf32>
    %10 = arith.mulf %9, %1 : vector<6x512xf32>
    %11 = vector.extract_strided_slice %6 {offsets = [0, 1], sizes = [6, 1], strides = [1, 1]} : vector<6x12xf32> to vector<6x1xf32>
    %12 = vector.broadcast %11 : vector<6x1xf32> to vector<6x512xf32>
    %13 = arith.mulf %12, %3 : vector<6x512xf32>
    %14 = arith.addf %10, %13 : vector<6x512xf32>
    %15 = vector.extract_strided_slice %6 {offsets = [0, 2], sizes = [6, 1], strides = [1, 1]} : vector<6x12xf32> to vector<6x1xf32>
    %16 = vector.broadcast %15 : vector<6x1xf32> to vector<6x512xf32>
    %17 = arith.mulf %16, %5 : vector<6x512xf32>
    %18 = arith.addf %14, %17 : vector<6x512xf32>
    %19 = vector.extract_strided_slice %6 {offsets = [0, 3], sizes = [6, 1], strides = [1, 1]} : vector<6x12xf32> to vector<6x1xf32>
    %20 = vector.broadcast %19 : vector<6x1xf32> to vector<6x512xf32>
    %21 = arith.addf %18, %20 : vector<6x512xf32>
    %22 = vector.extract_strided_slice %6 {offsets = [0, 4], sizes = [6, 1], strides = [1, 1]} : vector<6x12xf32> to vector<6x1xf32>
    %23 = vector.broadcast %22 : vector<6x1xf32> to vector<6x512xf32>
    %24 = arith.mulf %23, %1 : vector<6x512xf32>
    %25 = vector.extract_strided_slice %6 {offsets = [0, 5], sizes = [6, 1], strides = [1, 1]} : vector<6x12xf32> to vector<6x1xf32>
    %26 = vector.broadcast %25 : vector<6x1xf32> to vector<6x512xf32>
    %27 = arith.mulf %26, %3 : vector<6x512xf32>
    %28 = arith.addf %24, %27 : vector<6x512xf32>
    %29 = vector.extract_strided_slice %6 {offsets = [0, 6], sizes = [6, 1], strides = [1, 1]} : vector<6x12xf32> to vector<6x1xf32>
    %30 = vector.broadcast %29 : vector<6x1xf32> to vector<6x512xf32>
    %31 = arith.mulf %30, %5 : vector<6x512xf32>
    %32 = arith.addf %28, %31 : vector<6x512xf32>
    %33 = vector.extract_strided_slice %6 {offsets = [0, 7], sizes = [6, 1], strides = [1, 1]} : vector<6x12xf32> to vector<6x1xf32>
    %34 = vector.broadcast %33 : vector<6x1xf32> to vector<6x512xf32>
    %35 = arith.addf %32, %34 : vector<6x512xf32>
    %36 = vector.extract_strided_slice %6 {offsets = [0, 8], sizes = [6, 1], strides = [1, 1]} : vector<6x12xf32> to vector<6x1xf32>
    %37 = vector.broadcast %36 : vector<6x1xf32> to vector<6x512xf32>
    %38 = arith.mulf %37, %1 : vector<6x512xf32>
    %39 = vector.extract_strided_slice %6 {offsets = [0, 9], sizes = [6, 1], strides = [1, 1]} : vector<6x12xf32> to vector<6x1xf32>
    %40 = vector.broadcast %39 : vector<6x1xf32> to vector<6x512xf32>
    %41 = arith.mulf %40, %3 : vector<6x512xf32>
    %42 = arith.addf %38, %41 : vector<6x512xf32>
    %43 = vector.extract_strided_slice %6 {offsets = [0, 10], sizes = [6, 1], strides = [1, 1]} : vector<6x12xf32> to vector<6x1xf32>
    %44 = vector.broadcast %43 : vector<6x1xf32> to vector<6x512xf32>
    %45 = arith.mulf %44, %5 : vector<6x512xf32>
    %46 = arith.addf %42, %45 : vector<6x512xf32>
    %47 = vector.extract_strided_slice %6 {offsets = [0, 11], sizes = [6, 1], strides = [1, 1]} : vector<6x12xf32> to vector<6x1xf32>
    %48 = vector.broadcast %47 : vector<6x1xf32> to vector<6x512xf32>
    %49 = arith.addf %46, %48 : vector<6x512xf32>
    %50 = vector.shape_cast %21 : vector<6x512xf32> to vector<1x6x512xf32>
    %51 = vector.shape_cast %35 : vector<6x512xf32> to vector<1x6x512xf32>
    %52 = vector.shape_cast %49 : vector<6x512xf32> to vector<1x6x512xf32>
    %53 = tpu.concatenate %50, %51, %52 in 0 : vector<1x6x512xf32>, vector<1x6x512xf32>, vector<1x6x512xf32> -> vector<3x6x512xf32>
    %c0_10 = arith.constant 0 : index
    %c0_11 = arith.constant 0 : index
    %c0_12 = arith.constant 0 : index
    %54 = vector.load %arg3[%c0_10, %c0_11, %c0_12] : memref<3x6x512xf32, #tpu.memory_space<vmem>>, vector<3x6x512xf32>
    tpu.vector_store %arg3[%c0_10, %c0_11, %c0_12], %53 {strides = array<i32>} : memref<3x6x512xf32, #tpu.memory_space<vmem>>, vector<3x6x512xf32>,
    %55 = vector.extract_strided_slice %7 {offsets = [0, 0], sizes = [6, 1], strides = [1, 1]} : vector<6x12xf32> to vector<6x1xf32>
    %56 = vector.broadcast %55 : vector<6x1xf32> to vector<6x512xf32>
    %57 = arith.mulf %56, %1 : vector<6x512xf32>
    %58 = vector.extract_strided_slice %7 {offsets = [0, 1], sizes = [6, 1], strides = [1, 1]} : vector<6x12xf32> to vector<6x1xf32>
    %59 = vector.broadcast %58 : vector<6x1xf32> to vector<6x512xf32>
    %60 = arith.mulf %59, %3 : vector<6x512xf32>
    %61 = arith.addf %57, %60 : vector<6x512xf32>
    %62 = vector.extract_strided_slice %7 {offsets = [0, 2], sizes = [6, 1], strides = [1, 1]} : vector<6x12xf32> to vector<6x1xf32>
    %63 = vector.broadcast %62 : vector<6x1xf32> to vector<6x512xf32>
    %64 = arith.mulf %63, %5 : vector<6x512xf32>
    %65 = arith.addf %61, %64 : vector<6x512xf32>
    %66 = vector.extract_strided_slice %7 {offsets = [0, 3], sizes = [6, 1], strides = [1, 1]} : vector<6x12xf32> to vector<6x1xf32>
    %67 = vector.broadcast %66 : vector<6x1xf32> to vector<6x512xf32>
    %68 = arith.addf %65, %67 : vector<6x512xf32>
    %69 = vector.extract_strided_slice %7 {offsets = [0, 4], sizes = [6, 1], strides = [1, 1]} : vector<6x12xf32> to vector<6x1xf32>
    %70 = vector.broadcast %69 : vector<6x1xf32> to vector<6x512xf32>
    %71 = arith.mulf %70, %1 : vector<6x512xf32>
    %72 = vector.extract_strided_slice %7 {offsets = [0, 5], sizes = [6, 1], strides = [1, 1]} : vector<6x12xf32> to vector<6x1xf32>
    %73 = vector.broadcast %72 : vector<6x1xf32> to vector<6x512xf32>
    %74 = arith.mulf %73, %3 : vector<6x512xf32>
    %75 = arith.addf %71, %74 : vector<6x512xf32>
    %76 = vector.extract_strided_slice %7 {offsets = [0, 6], sizes = [6, 1], strides = [1, 1]} : vector<6x12xf32> to vector<6x1xf32>
    %77 = vector.broadcast %76 : vector<6x1xf32> to vector<6x512xf32>
    %78 = arith.mulf %77, %5 : vector<6x512xf32>
    %79 = arith.addf %75, %78 : vector<6x512xf32>
    %80 = vector.extract_strided_slice %7 {offsets = [0, 7], sizes = [6, 1], strides = [1, 1]} : vector<6x12xf32> to vector<6x1xf32>
    %81 = vector.broadcast %80 : vector<6x1xf32> to vector<6x512xf32>
    %82 = arith.addf %79, %81 : vector<6x512xf32>
    %83 = vector.extract_strided_slice %7 {offsets = [0, 8], sizes = [6, 1], strides = [1, 1]} : vector<6x12xf32> to vector<6x1xf32>
    %84 = vector.broadcast %83 : vector<6x1xf32> to vector<6x512xf32>
    %85 = arith.mulf %84, %1 : vector<6x512xf32>
    %86 = vector.extract_strided_slice %7 {offsets = [0, 9], sizes = [6, 1], strides = [1, 1]} : vector<6x12xf32> to vector<6x1xf32>
    %87 = vector.broadcast %86 : vector<6x1xf32> to vector<6x512xf32>
    %88 = arith.mulf %87, %3 : vector<6x512xf32>
    %89 = arith.addf %85, %88 : vector<6x512xf32>
    %90 = vector.extract_strided_slice %7 {offsets = [0, 10], sizes = [6, 1], strides = [1, 1]} : vector<6x12xf32> to vector<6x1xf32>
    %91 = vector.broadcast %90 : vector<6x1xf32> to vector<6x512xf32>
    %92 = arith.mulf %91, %5 : vector<6x512xf32>
    %93 = arith.addf %89, %92 : vector<6x512xf32>
    %94 = vector.extract_strided_slice %7 {offsets = [0, 11], sizes = [6, 1], strides = [1, 1]} : vector<6x12xf32> to vector<6x1xf32>
    %95 = vector.broadcast %94 : vector<6x1xf32> to vector<6x512xf32>
    %96 = arith.addf %93, %95 : vector<6x512xf32>
    %97 = vector.shape_cast %68 : vector<6x512xf32> to vector<1x6x512xf32>
    %98 = vector.shape_cast %82 : vector<6x512xf32> to vector<1x6x512xf32>
    %99 = vector.shape_cast %96 : vector<6x512xf32> to vector<1x6x512xf32>
    %100 = tpu.concatenate %97, %98, %99 in 0 : vector<1x6x512xf32>, vector<1x6x512xf32>, vector<1x6x512xf32> -> vector<3x6x512xf32>
    %c0_13 = arith.constant 0 : index
    %c0_14 = arith.constant 0 : index
    %c0_15 = arith.constant 0 : index
    %101 = vector.load %arg4[%c0_13, %c0_14, %c0_15] : memref<3x6x512xf32, #tpu.memory_space<vmem>>, vector<3x6x512xf32>
    tpu.vector_store %arg4[%c0_13, %c0_14, %c0_15], %100 {strides = array<i32>} : memref<3x6x512xf32, #tpu.memory_space<vmem>>, vector<3x6x512xf32>,
    %cst = arith.constant -1.600000e+01 : f32
    %102 = vector.broadcast %cst : f32 to vector<6x512xf32>
    %103 = arith.cmpf ogt, %68, %102 : vector<6x512xf32>
    %cst_16 = arith.constant 1.600000e+01 : f32
    %104 = vector.broadcast %cst_16 : f32 to vector<6x512xf32>
    %105 = arith.cmpf olt, %68, %104 : vector<6x512xf32>
    %106 = arith.andi %103, %105 : vector<6x512xi1>
    %cst_17 = arith.constant -1.000000e+00 : f32
    %107 = vector.broadcast %cst_17 : f32 to vector<6x512xf32>
    %108 = arith.cmpf ogt, %82, %107 : vector<6x512xf32>
    %cst_18 = arith.constant 3.000000e+00 : f32
    %109 = vector.broadcast %cst_18 : f32 to vector<6x512xf32>
    %110 = arith.cmpf olt, %82, %109 : vector<6x512xf32>
    %111 = arith.andi %108, %110 : vector<6x512xi1>
    %112 = arith.andi %106, %111 : vector<6x512xi1>
    %cst_19 = arith.constant 2.000000e+00 : f32
    %113 = vector.broadcast %cst_19 : f32 to vector<6x512xf32>
    %114 = arith.cmpf ogt, %96, %113 : vector<6x512xf32>
    %cst_20 = arith.constant 3.400000e+01 : f32
    %115 = vector.broadcast %cst_20 : f32 to vector<6x512xf32>
    %116 = arith.cmpf olt, %96, %115 : vector<6x512xf32>
    %117 = arith.andi %114, %116 : vector<6x512xi1>
    %118 = arith.andi %112, %117 : vector<6x512xi1>
    %119 = arith.extui %118 : vector<6x512xi1> to vector<6x512xi32>
    %120 = arith.sitofp %119 : vector<6x512xi32> to vector<6x512xf32>
    %c0_21 = arith.constant 0 : index
    %c0_22 = arith.constant 0 : index
    %121 = vector.load %arg5[%c0_21, %c0_22] : memref<6x512xf32, #tpu.memory_space<vmem>>, vector<6x512xf32>
    tpu.vector_store %arg5[%c0_21, %c0_22], %120 {strides = array<i32>} : memref<6x512xf32, #tpu.memory_space<vmem>>, vector<6x512xf32>,
    return
  }
}

</mosaic_0001>

<llo_original>
// kernel: tpu_custom_call.1
$region0: #{tpu_custom_call.1}
  #allocation0 [shape = 'u32[]', space=smem, size = 0x4, offset = 0x4, fixed_abs, tag = 'smem constant byte address 0x4 - core index']
  #allocation1 [shape = 'u32[72,128]{1,0:T(1,128)}', space=vmem, size = 0x9000, scoped, tag = 'internal scratch']
  %s0 = inlined_call_operand.hbm [shape: f32[6,12], index: 0, kind: input, shape index: {}]
  %s1 = inlined_call_operand.hbm [shape: f32[6,12], index: 1, kind: input, shape index: {}]
  %s2 = inlined_call_operand.hbm [shape: f32[3,6,512], index: 2, kind: input, shape index: {}]
  %s3 = inlined_call_operand.hbm [shape: f32[3,6,512], index: 3, kind: output, shape index: {0}]
  %s4 = inlined_call_operand.hbm [shape: f32[3,6,512], index: 4, kind: output, shape index: {1}]
  %s5 = inlined_call_operand.hbm [shape: f32[6,512], index: 5, kind: output, shape index: {2}]
  %6 = xla_tuple %s3, %s4, %s5
  %s7 = sld [smem:[#allocation0]]
  $region50: #{tpu_custom_call.1} parent=0
    _
  %s9 = ssub.s32 1, %s7
  %s10 = scalar_select 0, %s9, %s7
  $region1: #{tpu_custom_call.1} parent=0
    #allocation2 [shape = 'u8[4096]{0}', space=vmem, size = 0x1000, scoped, tag = 'input window, operand 0, single buffered']
    #allocation3 [shape = 's32[1]{0}', space=sflag, size = 0x4, scoped, tag = 'scoped memory for tpu_custom_call.1']
    #allocation4 [shape = 's32[1]{0}', space=sflag, size = 0x4, scoped, tag = 'scoped memory for tpu_custom_call.1']
    #allocation5 [shape = 'u8[4096]{0}', space=vmem, size = 0x1000, scoped, tag = 'input window, operand 1, single buffered']
    #allocation6 [shape = 's32[1]{0}', space=sflag, size = 0x4, scoped, tag = 'scoped memory for tpu_custom_call.1']
    #allocation7 [shape = 'u8[49152]{0}', space=vmem, size = 0xc000, scoped, tag = 'input window, operand 2, single buffered']
    #allocation8 [shape = 'u8[49152]{0}', space=vmem, size = 0xc000, scoped, tag = 'output window, operand 0, single buffered']
    #allocation9 [shape = 'u8[49152]{0}', space=vmem, size = 0xc000, scoped, tag = 'output window, operand 1, single buffered']
    #allocation10 [shape = 's32[1]{0}', space=sflag, size = 0x4, scoped, tag = 'scoped memory for tpu_custom_call.1']
    #allocation11 [shape = 'u8[16384]{0}', space=vmem, size = 0x4000, scoped, tag = 'output window, operand 2, single buffered']
    %11 = vsyncpa [#allocation3], 0
    %12 = vsyncpa [#allocation6], 0
    %13 = vsyncpa [#allocation4], 0
    %14 = vsyncpa [#allocation10], 0
    // Predicated region
    $region2: #{tpu_custom_call.1} parent=1 // pred_check
      _
    $region3: #{tpu_custom_call.1} parent=1 // pred_check_branch
      %16 = sbr.rel (0) target = $region5
    $region4: #{tpu_custom_call.1} parent=1 // pred_region
      %18 = vsyncadd [#allocation3], 0
      %s20 = sshll.u32 %s0, 4
      %s21 = int_to_ptr.hbm [resolvable:$true] %s20
      %s22 = sshll.u32 [#allocation2], 4
      %s23 = int_to_ptr.vmem [resolvable:$true] %s22
      %25 = dma.hbm_to_vmem [thread:$0]  %s21, 128, %s23, [#allocation3]
    $region5: #{tpu_custom_call.1} parent=1 // pred_fallthru
      _
    // Predicated region
    $region6: #{tpu_custom_call.1} parent=1 // pred_check
      _
    $region7: #{tpu_custom_call.1} parent=1 // pred_check_branch
      %27 = sbr.rel (0) target = $region9
    $region8: #{tpu_custom_call.1} parent=1 // pred_region
      %29 = vsyncadd [#allocation6], 0
      %s31 = sshll.u32 %s1, 4
      %s32 = int_to_ptr.hbm [resolvable:$true] %s31
      %s33 = sshll.u32 [#allocation5], 4
      %s34 = int_to_ptr.vmem [resolvable:$true] %s33
      %36 = dma.hbm_to_vmem [thread:$0]  %s32, 128, %s34, [#allocation6]
    $region9: #{tpu_custom_call.1} parent=1 // pred_fallthru
      _
    // Predicated region
    $region10: #{tpu_custom_call.1} parent=1 // pred_check
      _
    $region11: #{tpu_custom_call.1} parent=1 // pred_check_branch
      %38 = sbr.rel (0) target = $region13
    $region12: #{tpu_custom_call.1} parent=1 // pred_region
      %40 = vsyncadd [#allocation6], 0
      %s41 = sshll.u32 %s2, 4
      %s42 = int_to_ptr.hbm [resolvable:$true] %s41
      %s43 = sshll.u32 [#allocation7], 4
      %s44 = int_to_ptr.vmem [resolvable:$true] %s43
      %49 = dma.hbm_to_vmem [thread:$0]  %s42, 1536, %s44, [#allocation6], 512, 512, 32
    $region13: #{tpu_custom_call.1} parent=1 // pred_fallthru
      _
    // Predicated region
    $region14: #{tpu_custom_call.1} parent=1 // pred_check
      _
    $region15: #{tpu_custom_call.1} parent=1 // pred_check_branch
      %51 = sbr.rel (0) target = $region17
    $region16: #{tpu_custom_call.1} parent=1 // pred_region
      %53 = dma.done [#allocation3], 128
    $region17: #{tpu_custom_call.1} parent=1 // pred_fallthru
      _
    // Predicated region
    $region18: #{tpu_custom_call.1} parent=1 // pred_check
      _
    $region19: #{tpu_custom_call.1} parent=1 // pred_check_branch
      %55 = sbr.rel (0) target = $region21
    $region20: #{tpu_custom_call.1} parent=1 // pred_region
      %57 = dma.done [#allocation6], 128
    $region21: #{tpu_custom_call.1} parent=1 // pred_fallthru
      _
    // Predicated region
    $region22: #{tpu_custom_call.1} parent=1 // pred_check
      _
    $region23: #{tpu_custom_call.1} parent=1 // pred_check_branch
      %59 = sbr.rel (0) target = $region25
    $region24: #{tpu_custom_call.1} parent=1 // pred_region
      %61 = dma.done [#allocation6], 1536
    $region25: #{tpu_custom_call.1} parent=1 // pred_fallthru
      _
    %v62 = vld [vmem:[#allocation7] sm:$0x3f]
    %v63 = vld [vmem:[#allocation7 + $0x8] sm:$0x3f]
    %v64 = vld [vmem:[#allocation7 + $0x10] sm:$0x3f]
    %v65 = vld [vmem:[#allocation7 + $0x18] sm:$0x3f]
    %s66 = scalar_lea.vmem [#allocation7], 32
    %v67 = vld [vmem:[%s66] sm:$0x3f]
    %v68 = vld [vmem:[%s66 + $0x8] sm:$0x3f]
    %v69 = vld [vmem:[%s66 + $0x10] sm:$0x3f]
    %v70 = vld [vmem:[%s66 + $0x18] sm:$0x3f]
    %s71 = scalar_lea.vmem [#allocation7], 64
    %v72 = vld [vmem:[%s71] sm:$0x3f]
    %v73 = vld [vmem:[%s71 + $0x8] sm:$0x3f]
    %v74 = vld [vmem:[%s71 + $0x10] sm:$0x3f]
    %v75 = vld [vmem:[%s71 + $0x18] sm:$0x3f]
    %v76 = vld [vmem:[#allocation2] sm:$0x3f]
    %v77 = vld [vmem:[#allocation5] sm:$0x3f]
    %79 = vset.pattern.permute.xlu0 0
    %80 = vperm.xlu0 %79, %v76
    %v81 = vpop.permute.xlu0 %80
    %v83 = vmul.f32 %v81, %v62
    %v84 = vmul.f32 %v81, %v63
    %v85 = vmul.f32 %v81, %v64
    %v86 = vmul.f32 %v81, %v65
    %87 = vset.pattern.permute.xlu0 1
    %88 = vperm.xlu0 %87, %v76
    %v89 = vpop.permute.xlu0 %88
    %v91 = vmul.f32 %v89, %v67
    %v92 = vmul.f32 %v89, %v68
    %v93 = vmul.f32 %v89, %v69
    %v94 = vmul.f32 %v89, %v70
    %v95 = vadd.f32 %v83, %v91
    %v96 = vadd.f32 %v84, %v92
    %v97 = vadd.f32 %v85, %v93
    %v98 = vadd.f32 %v86, %v94
    %99 = vset.pattern.permute.xlu0 2
    %100 = vperm.xlu0 %99, %v76
    %v101 = vpop.permute.xlu0 %100
    %v103 = vmul.f32 %v101, %v72
    %v104 = vmul.f32 %v101, %v73
    %v105 = vmul.f32 %v101, %v74
    %v106 = vmul.f32 %v101, %v75
    %v107 = vadd.f32 %v95, %v103
    %v108 = vadd.f32 %v96, %v104
    %v109 = vadd.f32 %v97, %v105
    %v110 = vadd.f32 %v98, %v106
    %111 = vset.pattern.permute.xlu0 3
    %112 = vperm.xlu0 %111, %v76
    %v113 = vpop.permute.xlu0 %112
    %v115 = vadd.f32 %v107, %v113
    %v116 = vadd.f32 %v108, %v113
    %v117 = vadd.f32 %v109, %v113
    %v118 = vadd.f32 %v110, %v113
    %119 = vset.pattern.permute.xlu0 4
    %120 = vperm.xlu0 %119, %v76
    %v121 = vpop.permute.xlu0 %120
    %v123 = vmul.f32 %v121, %v62
    %v124 = vmul.f32 %v121, %v63
    %v125 = vmul.f32 %v121, %v64
    %v126 = vmul.f32 %v121, %v65
    %127 = vset.pattern.permute.xlu0 5
    %128 = vperm.xlu0 %127, %v76
    %v129 = vpop.permute.xlu0 %128
    %v131 = vmul.f32 %v129, %v67
    %v132 = vmul.f32 %v129, %v68
    %v133 = vmul.f32 %v129, %v69
    %v134 = vmul.f32 %v129, %v70
    %v135 = vadd.f32 %v123, %v131
    %v136 = vadd.f32 %v124, %v132
    %v137 = vadd.f32 %v125, %v133
    %v138 = vadd.f32 %v126, %v134
    %139 = vset.pattern.permute.xlu0 6
    %140 = vperm.xlu0 %139, %v76
    %v141 = vpop.permute.xlu0 %140
    %v143 = vmul.f32 %v141, %v72
    %v144 = vmul.f32 %v141, %v73
    %v145 = vmul.f32 %v141, %v74
    %v146 = vmul.f32 %v141, %v75
    %v147 = vadd.f32 %v135, %v143
    %v148 = vadd.f32 %v136, %v144
    %v149 = vadd.f32 %v137, %v145
    %v150 = vadd.f32 %v138, %v146
    %151 = vset.pattern.permute.xlu0 7
    %152 = vperm.xlu0 %151, %v76
    %v153 = vpop.permute.xlu0 %152
    %v155 = vadd.f32 %v147, %v153
    %v156 = vadd.f32 %v148, %v153
    %v157 = vadd.f32 %v149, %v153
    %v158 = vadd.f32 %v150, %v153
    %159 = vset.pattern.permute.xlu0 8
    %160 = vperm.xlu0 %159, %v76
    %v161 = vpop.permute.xlu0 %160
    %v163 = vmul.f32 %v161, %v62
    %v164 = vmul.f32 %v161, %v63
    %v165 = vmul.f32 %v161, %v64
    %v166 = vmul.f32 %v161, %v65
    %167 = vset.pattern.permute.xlu0 9
    %168 = vperm.xlu0 %167, %v76
    %v169 = vpop.permute.xlu0 %168
    %v171 = vmul.f32 %v169, %v67
    %v172 = vmul.f32 %v169, %v68
    %v173 = vmul.f32 %v169, %v69
    %v174 = vmul.f32 %v169, %v70
    %v175 = vadd.f32 %v163, %v171
    %v176 = vadd.f32 %v164, %v172
    %v177 = vadd.f32 %v165, %v173
    %v178 = vadd.f32 %v166, %v174
    %179 = vset.pattern.permute.xlu0 10
    %180 = vperm.xlu0 %179, %v76
    %v181 = vpop.permute.xlu0 %180
    %v183 = vmul.f32 %v181, %v72
    %v184 = vmul.f32 %v181, %v73
    %v185 = vmul.f32 %v181, %v74
    %v186 = vmul.f32 %v181, %v75
    %v187 = vadd.f32 %v175, %v183
    %v188 = vadd.f32 %v176, %v184
    %v189 = vadd.f32 %v177, %v185
    %v190 = vadd.f32 %v178, %v186
    %191 = vset.pattern.permute.xlu0 11
    %192 = vperm.xlu0 %191, %v76
    %v193 = vpop.permute.xlu0 %192
    %v195 = vadd.f32 %v187, %v193
    %v196 = vadd.f32 %v188, %v193
    %v197 = vadd.f32 %v189, %v193
    %v198 = vadd.f32 %v190, %v193
    %199 = vst [vmem:[#allocation8] sm:$0x3f] %v115
    %200 = vst [vmem:[#allocation8 + $0x8] sm:$0x3f] %v116
    %201 = vst [vmem:[#allocation8 + $0x10] sm:$0x3f] %v117
    %202 = vst [vmem:[#allocation8 + $0x18] sm:$0x3f] %v118
    %203 = vst [vmem:[#allocation8 + $0x20] sm:$0x3f] %v155
    %204 = vst [vmem:[#allocation8 + $0x28] sm:$0x3f] %v156
    %205 = vst [vmem:[#allocation8 + $0x30] sm:$0x3f] %v157
    %206 = vst [vmem:[#allocation8 + $0x38] sm:$0x3f] %v158
    %207 = vst [vmem:[#allocation8 + $0x40] sm:$0x3f] %v195
    %208 = vst [vmem:[#allocation8 + $0x48] sm:$0x3f] %v196
    %209 = vst [vmem:[#allocation8 + $0x50] sm:$0x3f] %v197
    %210 = vst [vmem:[#allocation8 + $0x58] sm:$0x3f] %v198
    %212 = vset.pattern.permute.xlu0 0
    %213 = vperm.xlu0 %212, %v77
    %v214 = vpop.permute.xlu0 %213
    %v216 = vmul.f32 %v214, %v62
    %v217 = vmul.f32 %v214, %v63
    %v218 = vmul.f32 %v214, %v64
    %v219 = vmul.f32 %v214, %v65
    %220 = vset.pattern.permute.xlu0 1
    %221 = vperm.xlu0 %220, %v77
    %v222 = vpop.permute.xlu0 %221
    %v224 = vmul.f32 %v222, %v67
    %v225 = vmul.f32 %v222, %v68
    %v226 = vmul.f32 %v222, %v69
    %v227 = vmul.f32 %v222, %v70
    %v228 = vadd.f32 %v216, %v224
    %v229 = vadd.f32 %v217, %v225
    %v230 = vadd.f32 %v218, %v226
    %v231 = vadd.f32 %v219, %v227
    %232 = vset.pattern.permute.xlu0 2
    %233 = vperm.xlu0 %232, %v77
    %v234 = vpop.permute.xlu0 %233
    %v236 = vmul.f32 %v234, %v72
    %v237 = vmul.f32 %v234, %v73
    %v238 = vmul.f32 %v234, %v74
    %v239 = vmul.f32 %v234, %v75
    %v240 = vadd.f32 %v228, %v236
    %v241 = vadd.f32 %v229, %v237
    %v242 = vadd.f32 %v230, %v238
    %v243 = vadd.f32 %v231, %v239
    %244 = vset.pattern.permute.xlu0 3
    %245 = vperm.xlu0 %244, %v77
    %v246 = vpop.permute.xlu0 %245
    %v248 = vadd.f32 %v240, %v246
    %v249 = vadd.f32 %v241, %v246
    %v250 = vadd.f32 %v242, %v246
    %v251 = vadd.f32 %v243, %v246
    %252 = vset.pattern.permute.xlu0 4
    %253 = vperm.xlu0 %252, %v77
    %v254 = vpop.permute.xlu0 %253
    %v256 = vmul.f32 %v254, %v62
    %v257 = vmul.f32 %v254, %v63
    %v258 = vmul.f32 %v254, %v64
    %v259 = vmul.f32 %v254, %v65
    %260 = vset.pattern.permute.xlu0 5
    %261 = vperm.xlu0 %260, %v77
    %v262 = vpop.permute.xlu0 %261
    %v264 = vmul.f32 %v262, %v67
    %v265 = vmul.f32 %v262, %v68
    %v266 = vmul.f32 %v262, %v69
    %v267 = vmul.f32 %v262, %v70
    %v268 = vadd.f32 %v256, %v264
    %v269 = vadd.f32 %v257, %v265
    %v270 = vadd.f32 %v258, %v266
    %v271 = vadd.f32 %v259, %v267
    %272 = vset.pattern.permute.xlu0 6
    %273 = vperm.xlu0 %272, %v77
    %v274 = vpop.permute.xlu0 %273
    %v276 = vmul.f32 %v274, %v72
    %v277 = vmul.f32 %v274, %v73
    %v278 = vmul.f32 %v274, %v74
    %v279 = vmul.f32 %v274, %v75
    %v280 = vadd.f32 %v268, %v276
    %v281 = vadd.f32 %v269, %v277
    %v282 = vadd.f32 %v270, %v278
    %v283 = vadd.f32 %v271, %v279
    %284 = vset.pattern.permute.xlu0 7
    %285 = vperm.xlu0 %284, %v77
    %v286 = vpop.permute.xlu0 %285
    %v288 = vadd.f32 %v280, %v286
    %v289 = vadd.f32 %v281, %v286
    %v290 = vadd.f32 %v282, %v286
    %v291 = vadd.f32 %v283, %v286
    %292 = vset.pattern.permute.xlu0 8
    %293 = vperm.xlu0 %292, %v77
    %v294 = vpop.permute.xlu0 %293
    %v296 = vmul.f32 %v294, %v62
    %v297 = vmul.f32 %v294, %v63
    %v298 = vmul.f32 %v294, %v64
    %v299 = vmul.f32 %v294, %v65
    %300 = vset.pattern.permute.xlu0 9
    %301 = vperm.xlu0 %300, %v77
    %v302 = vpop.permute.xlu0 %301
    %v304 = vmul.f32 %v302, %v67
    %v305 = vmul.f32 %v302, %v68
    %v306 = vmul.f32 %v302, %v69
    %v307 = vmul.f32 %v302, %v70
    %v308 = vadd.f32 %v296, %v304
    %v309 = vadd.f32 %v297, %v305
    %v310 = vadd.f32 %v298, %v306
    %v311 = vadd.f32 %v299, %v307
    %312 = vset.pattern.permute.xlu0 10
    %313 = vperm.xlu0 %312, %v77
    %v314 = vpop.permute.xlu0 %313
    %v316 = vmul.f32 %v314, %v72
    %v317 = vmul.f32 %v314, %v73
    %v318 = vmul.f32 %v314, %v74
    %v319 = vmul.f32 %v314, %v75
    %v320 = vadd.f32 %v308, %v316
    %v321 = vadd.f32 %v309, %v317
    %v322 = vadd.f32 %v310, %v318
    %v323 = vadd.f32 %v311, %v319
    %324 = vset.pattern.permute.xlu0 11
    %325 = vperm.xlu0 %324, %v77
    %v326 = vpop.permute.xlu0 %325
    %v328 = vadd.f32 %v320, %v326
    %v329 = vadd.f32 %v321, %v326
    %v330 = vadd.f32 %v322, %v326
    %v331 = vadd.f32 %v323, %v326
    %332 = vst [vmem:[#allocation9] sm:$0x3f] %v248
    %333 = vst [vmem:[#allocation9 + $0x8] sm:$0x3f] %v249
    %334 = vst [vmem:[#allocation9 + $0x10] sm:$0x3f] %v250
    %335 = vst [vmem:[#allocation9 + $0x18] sm:$0x3f] %v251
    %336 = vst [vmem:[#allocation9 + $0x20] sm:$0x3f] %v288
    %337 = vst [vmem:[#allocation9 + $0x28] sm:$0x3f] %v289
    %338 = vst [vmem:[#allocation9 + $0x30] sm:$0x3f] %v290
    %339 = vst [vmem:[#allocation9 + $0x38] sm:$0x3f] %v291
    %340 = vst [vmem:[#allocation9 + $0x40] sm:$0x3f] %v328
    %341 = vst [vmem:[#allocation9 + $0x48] sm:$0x3f] %v329
    %342 = vst [vmem:[#allocation9 + $0x50] sm:$0x3f] %v330
    %343 = vst [vmem:[#allocation9 + $0x58] sm:$0x3f] %v331
    %vm344 = vcmp.gt.f32.partialorder %v248, -16.0
    %vm345 = vcmp.gt.f32.partialorder %v249, -16.0
    %vm346 = vcmp.gt.f32.partialorder %v250, -16.0
    %vm347 = vcmp.gt.f32.partialorder %v251, -16.0
    %vm348 = vcmp.lt.f32.partialorder %v248, 16.0
    %vm349 = vcmp.lt.f32.partialorder %v249, 16.0
    %vm350 = vcmp.lt.f32.partialorder %v250, 16.0
    %vm351 = vcmp.lt.f32.partialorder %v251, 16.0
    %vm352 = vmand %vm344, %vm348
    %vm353 = vmand %vm345, %vm349
    %vm354 = vmand %vm346, %vm350
    %vm355 = vmand %vm347, %vm351
    %vm356 = vcmp.gt.f32.partialorder %v288, -1.0
    %vm357 = vcmp.gt.f32.partialorder %v289, -1.0
    %vm358 = vcmp.gt.f32.partialorder %v290, -1.0
    %vm359 = vcmp.gt.f32.partialorder %v291, -1.0
    %vm360 = vcmp.lt.f32.partialorder %v288, 3.0
    %vm361 = vcmp.lt.f32.partialorder %v289, 3.0
    %vm362 = vcmp.lt.f32.partialorder %v290, 3.0
    %vm363 = vcmp.lt.f32.partialorder %v291, 3.0
    %vm364 = vmand %vm356, %vm360
    %vm365 = vmand %vm357, %vm361
    %vm366 = vmand %vm358, %vm362
    %vm367 = vmand %vm359, %vm363
    %vm368 = vmand %vm352, %vm364
    %vm369 = vmand %vm353, %vm365
    %vm370 = vmand %vm354, %vm366
    %vm371 = vmand %vm355, %vm367
    %vm372 = vcmp.gt.f32.partialorder %v328, 2.0
    %vm373 = vcmp.gt.f32.partialorder %v329, 2.0
    %vm374 = vcmp.gt.f32.partialorder %v330, 2.0
    %vm375 = vcmp.gt.f32.partialorder %v331, 2.0
    %vm376 = vcmp.lt.f32.partialorder %v328, 34.0
    %vm377 = vcmp.lt.f32.partialorder %v329, 34.0
    %vm378 = vcmp.lt.f32.partialorder %v330, 34.0
    %vm379 = vcmp.lt.f32.partialorder %v331, 34.0
    %vm380 = vmand %vm372, %vm376
    %vm381 = vmand %vm373, %vm377
    %vm382 = vmand %vm374, %vm378
    %vm383 = vmand %vm375, %vm379
    %vm384 = vmand %vm368, %vm380
    %vm385 = vmand %vm369, %vm381
    %vm386 = vmand %vm370, %vm382
    %vm387 = vmand %vm371, %vm383
    %v388 = vsel %vm384, 1, 0
    %v389 = vsel %vm385, 1, 0
    %v390 = vsel %vm386, 1, 0
    %v391 = vsel %vm387, 1, 0
    %v392 = vcvt.s32.f32 %v388
    %v393 = vcvt.s32.f32 %v389
    %v394 = vcvt.s32.f32 %v390
    %v395 = vcvt.s32.f32 %v391
    %396 = vst [vmem:[#allocation11] sm:$0x3f] %v392
    %397 = vst [vmem:[#allocation11 + $0x8] sm:$0x3f] %v393
    %398 = vst [vmem:[#allocation11 + $0x10] sm:$0x3f] %v394
    %399 = vst [vmem:[#allocation11 + $0x18] sm:$0x3f] %v395
    // Predicated region
    $region26: #{tpu_custom_call.1} parent=1 // pred_check
      _
    $region27: #{tpu_custom_call.1} parent=1 // pred_check_branch
      %401 = sbr.rel (0) target = $region29
    $region28: #{tpu_custom_call.1} parent=1 // pred_region
      %403 = vsyncadd [#allocation4], 0
      %s404 = sshll.u32 [#allocation8], 4
      %s405 = int_to_ptr.vmem [resolvable:$true] %s404
      %s406 = sshll.u32 %s3, 4
      %s407 = int_to_ptr.hbm [resolvable:$true] %s406
      %412 = dma.vmem_to_hbm [thread:$0]  %s405, 1536, %s407, [#allocation4], 512, 512, 32
    $region29: #{tpu_custom_call.1} parent=1 // pred_fallthru
      _
    // Predicated region
    $region30: #{tpu_custom_call.1} parent=1 // pred_check
      _
    $region31: #{tpu_custom_call.1} parent=1 // pred_check_branch
      %414 = sbr.rel (0) target = $region33
    $region32: #{tpu_custom_call.1} parent=1 // pred_region
      %416 = vsyncadd [#allocation10], 0
      %s417 = sshll.u32 [#allocation9], 4
      %s418 = int_to_ptr.vmem [resolvable:$true] %s417
      %s419 = sshll.u32 %s4, 4
      %s420 = int_to_ptr.hbm [resolvable:$true] %s419
      %425 = dma.vmem_to_hbm [thread:$0]  %s418, 1536, %s420, [#allocation10], 512, 512, 32
    $region33: #{tpu_custom_call.1} parent=1 // pred_fallthru
      _
    // Predicated region
    $region34: #{tpu_custom_call.1} parent=1 // pred_check
      _
    $region35: #{tpu_custom_call.1} parent=1 // pred_check_branch
      %427 = sbr.rel (0) target = $region37
    $region36: #{tpu_custom_call.1} parent=1 // pred_region
      %429 = vsyncadd [#allocation10], 0
      %s431 = sshll.u32 [#allocation11], 4
      %s432 = int_to_ptr.vmem [resolvable:$true] %s431
      %s433 = sshll.u32 %s5, 4
      %s434 = int_to_ptr.hbm [resolvable:$true] %s433
      %436 = dma.vmem_to_hbm [thread:$0]  %s432, 512, %s434, [#allocation10]
    $region37: #{tpu_custom_call.1} parent=1 // pred_fallthru
      _
    // Predicated region
    $region38: #{tpu_custom_call.1} parent=1 // pred_check
      _
    $region39: #{tpu_custom_call.1} parent=1 // pred_check_branch
      %438 = sbr.rel (0) target = $region41
    $region40: #{tpu_custom_call.1} parent=1 // pred_region
      %440 = dma.done [#allocation4], 1536
    $region41: #{tpu_custom_call.1} parent=1 // pred_fallthru
      _
    // Predicated region
    $region42: #{tpu_custom_call.1} parent=1 // pred_check
      _
    $region43: #{tpu_custom_call.1} parent=1 // pred_check_branch
      %442 = sbr.rel (0) target = $region45
    $region44: #{tpu_custom_call.1} parent=1 // pred_region
      %444 = dma.done [#allocation10], 1536
    $region45: #{tpu_custom_call.1} parent=1 // pred_fallthru
      _
    // Predicated region
    $region46: #{tpu_custom_call.1} parent=1 // pred_check
      _
    $region47: #{tpu_custom_call.1} parent=1 // pred_check_branch
      %446 = sbr.rel (0) target = $region49
    $region48: #{tpu_custom_call.1} parent=1 // pred_region
      %448 = dma.done [#allocation10], 512
    $region49: #{tpu_custom_call.1} parent=1 // pred_fallthru
      _
    %449 = vsyncpa [#allocation3], 1
    %450 = vsyncpa [#allocation6], 1
    %451 = vsyncpa [#allocation4], 1
    %452 = vsyncpa [#allocation10], 1

</llo_original>
